<compile_context>
chip_gen: v5e
topology: v5e:2x2
jax: 0.10.0
libtpu: 0.0.40
codegen_flags: <defaults>
</compile_context>

<pallas_src>
import functools

import jax
import jax.numpy as jnp
import numpy as np
from jax.experimental import pallas as pl
from jax.experimental.pallas import tpu as pltpu

_LANES = 128


def _round_up(x, m):
    return ((x + m - 1) // m) * m


def _packed_kernel(t_ref, w_ref, o_ref, *, pack):
    """Lane-packed TimeEncode block.

    t_ref: (tm, pack) f32, w_ref: (pack, 128) f32, o_ref: (tm, 128) f32.
    Output lane j of packed row r holds cos(t[r*pack + j//dim] * weight[j%dim]).
    w_ref row c carries the real weight values in its own lane group and exact
    zeros elsewhere, so sum_c t[:, c] * w[c, :] reproduces the scalar product
    t*w bit-exactly (only exact zeros are added) with no cross-lane reshuffle.
    """
    t = t_ref[...]                                   # (tm, pack)
    w = w_ref[...]                                   # (pack, 128)
    arg = t[:, 0:1] * w[0:1, :]                      # (tm,1)*(1,128) -> (tm,128)
    for c in range(1, pack):
        arg = arg + t[:, c:c + 1] * w[c:c + 1, :]
    o_ref[...] = jnp.cos(arg)


def _plain_kernel(t_ref, w_ref, o_ref):
    """Fallback (dim does not divide 128): t_ref (tm,1), w_ref (1,dim), o_ref (tm,dim)."""
    o_ref[...] = jnp.cos(t_ref[...] * w_ref[...])


def time_encode(t, weight, *, tm_rows=2048, min_pallas_elems=0):
    """Pallas TimeEncode forward.

    t: any shape; weight: (dim, 1) or (dim,).  Returns (N, dim) float32 with
    N = t.size, equal to cos(t.reshape(-1,1) * weight.T) (bias is frozen zeros
    in the module and therefore omitted).
    """
    w_flat = jnp.asarray(weight, jnp.float32).reshape(-1)
    dim = int(w_flat.shape[0])
    t_flat = jnp.ravel(jnp.asarray(t, jnp.float32))
    n = int(t_flat.shape[0])

    # Tiny inputs: kernel-dispatch overhead dominates; plain XLA is as fast.
    # (Set min_pallas_elems ~ 65536 in production; 0 here so the kernel runs.)
    if n * dim <= min_pallas_elems:
        return jnp.cos(t_flat[:, None] * w_flat[None, :])

    if dim < _LANES and _LANES % dim == 0:
        # ----- lane-packed path: view (N, dim) row-major as (N/pack, 128) -----
        pack = _LANES // dim
        n_pad = _round_up(max(n, 1), pack * 8)       # packed rows multiple of 8
        if n_pad != n:
            t_flat = jnp.pad(t_flat, (0, n_pad - n))
        rows = n_pad // pack
        t2 = t_flat.reshape(rows, pack)

        # (pack, 128) masked / tiled weight: exact weight values in each row's
        # own lane group, exact zeros elsewhere.
        lane_group = np.arange(_LANES) // dim                        # (128,)
        mask = lane_group[None, :] == np.arange(pack)[:, None]       # (pack, 128)
        w_tiled = jnp.tile(w_flat, pack)                             # (128,)
        w_masked = jnp.where(jnp.asarray(mask), w_tiled[None, :],
                             jnp.zeros((), jnp.float32))             # (pack, 128)

        tm = max(8, (min(tm_rows, rows) // 8) * 8)
        grid = (pl.cdiv(rows, tm),)

        out_packed = pl.pallas_call(
            functools.partial(_packed_kernel, pack=pack),
            out_shape=jax.ShapeDtypeStruct((rows, _LANES), jnp.float32),
            grid_spec=pltpu.PrefetchScalarGridSpec(
                num_scalar_prefetch=0,
                grid=grid,
                in_specs=[
                    pl.BlockSpec((tm, pack), lambda i: (i, 0)),       # t rows
                    pl.BlockSpec((pack, _LANES), lambda i: (0, 0)),   # weight (constant block)
                ],
                out_specs=pl.BlockSpec((tm, _LANES), lambda i: (i, 0)),
            ),
            # v5e/v6e: single TensorCore. On v7x, pltpu.CORE_PARALLEL on this
            # axis would shard row blocks across the 2 TCs; kept portable here.
            compiler_params=pltpu.CompilerParams(
                dimension_semantics=("parallel",)),
        )(t2, w_masked)

        out = out_packed.reshape(n_pad, dim)          # metadata-only reshape
        return out if n_pad == n else out[:n]

    # ----- fallback path: straightforward (tm, dim) blocks -----
    # (lane-dense automatically when dim is a multiple of 128)
    n_pad = _round_up(max(n, 1), 8)
    if n_pad != n:
        t_flat = jnp.pad(t_flat, (0, n_pad - n))
    t2 = t_flat.reshape(n_pad, 1)
    w_row = w_flat.reshape(1, dim)
    tm = max(8, (min(tm_rows, n_pad) // 8) * 8)
    grid = (pl.cdiv(n_pad, tm),)

    out = pl.pallas_call(
        _plain_kernel,
        out_shape=jax.ShapeDtypeStruct((n_pad, dim), jnp.float32),
        grid_spec=pltpu.PrefetchScalarGridSpec(
            num_scalar_prefetch=0,
            grid=grid,
            in_specs=[
                pl.BlockSpec((tm, 1), lambda i: (i, 0)),
                pl.BlockSpec((1, dim), lambda i: (0, 0)),
            ],
            out_specs=pl.BlockSpec((tm, dim), lambda i: (i, 0)),
        ),
        compiler_params=pltpu.CompilerParams(dimension_semantics=("parallel",)),
    )(t2, w_row)
    return out if n_pad == n else out[:n]


def make_params(dim):
    # Deterministic parameters exactly as in TimeEncode.reset_parameters().
    weight = jnp.asarray(
        (1.0 / 10.0 ** np.linspace(0, 9, dim, dtype=np.float32)).astype(np.float32)
    ).reshape(dim, 1)                                  # (dim, 1)
    bias = jnp.zeros((dim,), dtype=jnp.float32)        # frozen zeros (unused by kernel)
    return weight, bias


if __name__ == "__main__":
    dim = 32
    weight, bias = make_params(dim)

    # Small case matching typical module usage: batch=2, seq=8 -> N=16.
    key = jax.random.PRNGKey(0)
    t_small = jax.random.uniform(key, (2, 8), dtype=jnp.float32) * 100.0
    out_small = jax.block_until_ready(time_encode(t_small, weight))
    ref_small = jnp.cos(t_small.reshape(-1, 1) * weight.reshape(1, dim) + bias[None, :])
    np.testing.assert_allclose(np.asarray(out_small), np.asarray(ref_small),
                               rtol=1e-5, atol=1e-5)
    assert out_small.shape == (16, dim)

    # Larger ragged case: N=4999 exercises padding, multi-block grid, masked tail.
    t_big = jax.random.uniform(jax.random.PRNGKey(1), (4999,), dtype=jnp.float32) * 100.0
    out_big = jax.block_until_ready(time_encode(t_big, weight, tm_rows=512))
    ref_big = jnp.cos(t_big.reshape(-1, 1) * weight.reshape(1, dim) + bias[None, :])
    np.testing.assert_allclose(np.asarray(out_big), np.asarray(ref_big),
                               rtol=1e-5, atol=1e-5)
    assert out_big.shape == (4999, dim)

    print("KERNEL_OK")
</pallas_src>

<mosaic_0001>
module attributes {stable_mosaic.version = 11 : i64} {
  func.func @_packed_kernel(%arg0: i32, %arg1: memref<8x4xf32, #tpu.memory_space<vmem>>, %arg2: memref<4x128xf32, #tpu.memory_space<vmem>>, %arg3: memref<8x128xf32, #tpu.memory_space<vmem>>) attributes {dimension_semantics = [#tpu.dimension_semantics<parallel>], iteration_bounds = array<i64: 1>, scalar_prefetch = 0 : i64, scratch_operands = 0 : i64, tpu.core_type = #tpu.core_type<tc>, window_params = [{transform_indices = @transform_0, window_bounds = array<i64: 8, 4>}, {pipeline_mode = #tpu.pipeline_mode<synchronous>, transform_indices = @transform_1, window_bounds = array<i64: 4, 128>}, {transform_indices = @transform_2, window_bounds = array<i64: 8, 128>}]} {
    %c0 = arith.constant 0 : index
    %c0_0 = arith.constant 0 : index
    %0 = vector.load %arg1[%c0, %c0_0] : memref<8x4xf32, #tpu.memory_space<vmem>>, vector<8x4xf32>
    %c0_1 = arith.constant 0 : index
    %c0_2 = arith.constant 0 : index
    %1 = vector.load %arg2[%c0_1, %c0_2] : memref<4x128xf32, #tpu.memory_space<vmem>>, vector<4x128xf32>
    %2 = vector.extract_strided_slice %0 {offsets = [0, 0], sizes = [8, 1], strides = [1, 1]} : vector<8x4xf32> to vector<8x1xf32>
    %3 = vector.extract_strided_slice %1 {offsets = [0, 0], sizes = [1, 128], strides = [1, 1]} : vector<4x128xf32> to vector<1x128xf32>
    %4 = vector.broadcast %2 : vector<8x1xf32> to vector<8x128xf32>
    %5 = vector.broadcast %3 : vector<1x128xf32> to vector<8x128xf32>
    %6 = arith.mulf %4, %5 : vector<8x128xf32>
    %7 = vector.extract_strided_slice %0 {offsets = [0, 1], sizes = [8, 1], strides = [1, 1]} : vector<8x4xf32> to vector<8x1xf32>
    %8 = vector.extract_strided_slice %1 {offsets = [1, 0], sizes = [1, 128], strides = [1, 1]} : vector<4x128xf32> to vector<1x128xf32>
    %9 = vector.broadcast %7 : vector<8x1xf32> to vector<8x128xf32>
    %10 = vector.broadcast %8 : vector<1x128xf32> to vector<8x128xf32>
    %11 = arith.mulf %9, %10 : vector<8x128xf32>
    %12 = arith.addf %6, %11 : vector<8x128xf32>
    %13 = vector.extract_strided_slice %0 {offsets = [0, 2], sizes = [8, 1], strides = [1, 1]} : vector<8x4xf32> to vector<8x1xf32>
    %14 = vector.extract_strided_slice %1 {offsets = [2, 0], sizes = [1, 128], strides = [1, 1]} : vector<4x128xf32> to vector<1x128xf32>
    %15 = vector.broadcast %13 : vector<8x1xf32> to vector<8x128xf32>
    %16 = vector.broadcast %14 : vector<1x128xf32> to vector<8x128xf32>
    %17 = arith.mulf %15, %16 : vector<8x128xf32>
    %18 = arith.addf %12, %17 : vector<8x128xf32>
    %19 = vector.extract_strided_slice %0 {offsets = [0, 3], sizes = [8, 1], strides = [1, 1]} : vector<8x4xf32> to vector<8x1xf32>
    %20 = vector.extract_strided_slice %1 {offsets = [3, 0], sizes = [1, 128], strides = [1, 1]} : vector<4x128xf32> to vector<1x128xf32>
    %21 = vector.broadcast %19 : vector<8x1xf32> to vector<8x128xf32>
    %22 = vector.broadcast %20 : vector<1x128xf32> to vector<8x128xf32>
    %23 = arith.mulf %21, %22 : vector<8x128xf32>
    %24 = arith.addf %18, %23 : vector<8x128xf32>
    %25 = math.cos %24 : vector<8x128xf32>
    %c0_3 = arith.constant 0 : index
    %c0_4 = arith.constant 0 : index
    %26 = vector.load %arg3[%c0_3, %c0_4] : memref<8x128xf32, #tpu.memory_space<vmem>>, vector<8x128xf32>
    tpu.vector_store %arg3[%c0_3, %c0_4], %25 {strides = array<i32>} : memref<8x128xf32, #tpu.memory_space<vmem>>, vector<8x128xf32>,
    return
  }
  func.func @transform_0(%arg0: i32) -> (i32, i32) {
    %c0_i32 = arith.constant 0 : i32
    %c0_i32_0 = arith.constant 0 : i32
    return %arg0, %c0_i32 : i32, i32
  }
  func.func @transform_1(%arg0: i32) -> (i32, i32) {
    %c0_i32 = arith.constant 0 : i32
    %c0_i32_0 = arith.constant 0 : i32
    %c0_i32_1 = arith.constant 0 : i32
    return %c0_i32, %c0_i32_0 : i32, i32
  }
  func.func @transform_2(%arg0: i32) -> (i32, i32) {
    %c0_i32 = arith.constant 0 : i32
    %c0_i32_0 = arith.constant 0 : i32
    return %arg0, %c0_i32 : i32, i32
  }
}

</mosaic_0001>

<llo_original>
// kernel: tpu_custom_call.1
$region0: #{tpu_custom_call.1}
  #allocation0 [shape = 'u32[]', space=smem, size = 0x4, offset = 0x4, fixed_abs, tag = 'smem constant byte address 0x4 - core index']
  #allocation1 [shape = 'u32[72,128]{1,0:T(1,128)}', space=vmem, size = 0x9000, scoped, tag = 'internal scratch']
  %s0 = inlined_call_operand.vmem [shape: f32[8,4], index: 0, kind: input, shape index: {}]
  %s1 = inlined_call_operand.vmem [shape: f32[4,128], index: 1, kind: input, shape index: {}]
  %s2 = inlined_call_operand.hbm [shape: f32[8,128], index: 2, kind: output, shape index: {}]
  %s3 = sld [smem:[#allocation0]]
  $region18: #{tpu_custom_call.1} parent=0
    _
  %s5 = ssub.s32 1, %s3
  %s6 = scalar_select 0, %s5, %s3
  $region1: #{tpu_custom_call.1} parent=0
    #allocation2 [shape = 'u8[4096]{0}', space=vmem, size = 0x1000, scoped, tag = 'output window, operand 0, single buffered']
    #allocation3 [shape = 's32[1]{0}', space=sflag, size = 0x4, scoped, tag = 'scoped memory for tpu_custom_call.1']
    %7 = vsyncpa [#allocation3], 0
    // Predicated region
    $region2: #{tpu_custom_call.1} parent=1 // pred_check
      _
    $region3: #{tpu_custom_call.1} parent=1 // pred_check_branch
      %9 = sbr.rel (0) target = $region5
    $region4: #{tpu_custom_call.1} parent=1 // pred_region
      _
    $region5: #{tpu_custom_call.1} parent=1 // pred_fallthru
      _
    // Predicated region
    $region6: #{tpu_custom_call.1} parent=1 // pred_check
      _
    $region7: #{tpu_custom_call.1} parent=1 // pred_check_branch
      %11 = sbr.rel (0) target = $region9
    $region8: #{tpu_custom_call.1} parent=1 // pred_region
      _
    $region9: #{tpu_custom_call.1} parent=1 // pred_fallthru
      _
    %v12 = vld [vmem:[%s0] sm:$0xff]
    %v13 = vld [vmem:[%s1] sm:$0xf]
    %15 = vset.pattern.permute.xlu0 0
    %16 = vperm.xlu0 %15, %v12
    %v17 = vpop.permute.xlu0 %16
    %v19 = vperm.slane %v13, 0
    %v20 = vmul.f32 %v17, %v19
    %21 = vset.pattern.permute.xlu0 1
    %22 = vperm.xlu0 %21, %v12
    %v23 = vpop.permute.xlu0 %22
    %v25 = vperm.slane %v13, 1
    %v26 = vmul.f32 %v23, %v25
    %v27 = vadd.f32 %v20, %v26
    %28 = vset.pattern.permute.xlu0 2
    %29 = vperm.xlu0 %28, %v12
    %v30 = vpop.permute.xlu0 %29
    %v32 = vperm.slane %v13, 2
    %v33 = vmul.f32 %v30, %v32
    %v34 = vadd.f32 %v27, %v33
    %35 = vset.pattern.permute.xlu0 3
    %36 = vperm.xlu0 %35, %v12
    %v37 = vpop.permute.xlu0 %36
    %v39 = vperm.slane %v13, 3
    %v40 = vmul.f32 %v37, %v39
    %v41 = vadd.f32 %v34, %v40
    %v42 = vand.u32 2147483647, %v41
    %vm43 = vcmp.le.f32.partialorder %v42, 0.7853982
    %vm44 = vcmp.lt.s32.totalorder %v41, 0
    %v45 = vand.u32 %v41, 2139095040
    %v46 = vshrl.u32 %v45, 23
    %v47 = vsub.s32 %v46, 127
    %v48 = vand.u32 2147483647, %v41
    %v49 = vand.u32 %v48, 8388607
    %v50 = vor.u32 %v49, 8388608
    %v51 = vsub.s32 0, %v50
    %v52 = vadd.s32 %v47, 1
    %vm53 = vcmp.gt.s32.totalorder %v52, 0
    %v54 = vsel %vm53, %v52, 0
    %v55 = vshrl.u32 %v54, 5
    %v56 = vand.u32 %v54, 31
    %v57 = vsub.s32 32, %v56
    %v58 = vshrl.u32 683565275, %v57
    %v59 = vshll.u32 683565275, %v56
    %v60 = vshrl.u32 2475754826, %v57
    %v61 = vor.u32 %v59, %v60
    %v62 = vshll.u32 2475754826, %v56
    %v63 = vshrl.u32 2131351028, %v57
    %v64 = vor.u32 %v62, %v63
    %v65 = vshll.u32 2131351028, %v56
    %v66 = vshrl.u32 2102212464, %v57
    %v67 = vor.u32 %v65, %v66
    %v68 = vshll.u32 2102212464, %v56
    %v69 = vshrl.u32 920167782, %v57
    %v70 = vor.u32 %v68, %v69
    %v71 = vshll.u32 920167782, %v56
    %v72 = vshrl.u32 1326507024, %v57
    %v73 = vor.u32 %v71, %v72
    %vm74 = vcmp.lt.s32.totalorder %v55, 1
    %vm75 = vcmp.lt.s32.totalorder %v55, 2
    %vm76 = vcmp.lt.s32.totalorder %v55, 3
    %vm77 = vcmp.lt.s32.totalorder %v55, 4
    %v78 = vsel %vm74, %v58, %v61
    %v79 = vsel %vm77, %v67, 2102212464
    %v80 = vsel %vm76, %v64, %v79
    %v81 = vsel %vm75, %v78, %v80
    %v82 = vsel %vm74, %v61, %v64
    %v83 = vsel %vm77, %v70, 920167782
    %v84 = vsel %vm76, %v67, %v83
    %v85 = vsel %vm75, %v82, %v84
    %v86 = vsel %vm74, %v64, %v67
    %v87 = vsel %vm77, %v73, 1326507024
    %v88 = vsel %vm76, %v70, %v87
    %v89 = vsel %vm75, %v86, %v88
    %v90 = vshll.u32 %v50, 8
    %v91 = vand.u32 %v90, 65535
    %v92 = vshrl.u32 %v90, 16
    %v93 = vand.u32 %v89, 65535
    %v94 = vshrl.u32 %v89, 16
    %v95 = vmul.u32 %v91, %v93
    %v96 = vmul.u32 %v91, %v94
    %v97 = vmul.u32 %v92, %v93
    %v98 = vmul.u32 %v92, %v94
    %v99 = vshll.u32 %v96, 16
    %v100 = vshrl.u32 %v96, 16
    %v101 = vshll.u32 %v97, 16
    %v102 = vshrl.u32 %v97, 16
    %vm103 = vc.u32 %v95, %v99
    %v104 = vsel %vm103, 1, 0
    %v105 = vadd.s32 %v95, %v99
    %v106 = vadd.s32 %v98, %v104
    %vm107 = vc.u32 %v105, %v101
    %v108 = vsel %vm107, 1, 0
    %v109 = vadd.s32 %v105, %v101
    %v110 = vadd.s32 %v106, %v108
    %v111 = vadd.s32 %v110, %v100
    %v112 = vadd.s32 %v111, %v102
    %v113 = vand.u32 %v90, 65535
    %v114 = vshrl.u32 %v90, 16
    %v115 = vand.u32 %v85, 65535
    %v116 = vshrl.u32 %v85, 16
    %v117 = vmul.u32 %v113, %v115
    %v118 = vmul.u32 %v113, %v116
    %v119 = vmul.u32 %v114, %v115
    %v120 = vmul.u32 %v114, %v116
    %v121 = vshll.u32 %v118, 16
    %v122 = vshrl.u32 %v118, 16
    %v123 = vshll.u32 %v119, 16
    %v124 = vshrl.u32 %v119, 16
    %vm125 = vc.u32 %v117, %v121
    %v126 = vsel %vm125, 1, 0
    %v127 = vadd.s32 %v117, %v121
    %v128 = vadd.s32 %v120, %v126
    %vm129 = vc.u32 %v127, %v123
    %v130 = vsel %vm129, 1, 0
    %v131 = vadd.s32 %v127, %v123
    %v132 = vadd.s32 %v128, %v130
    %v133 = vadd.s32 %v132, %v122
    %v134 = vadd.s32 %v133, %v124
    %v135 = vmul.u32 %v90, %v81
    %v136 = vadd.s32 %v112, %v131
    %vm137 = vc.u32 %v112, %v131
    %v138 = vadd.s32 %v134, 1
    %v139 = vsel %vm137, %v138, %v134
    %v140 = vadd.s32 %v135, %v139
    %v141 = vadd.s32 %v140, 536870912
    %v142 = vshrl.u32 %v141, 30
    %v143 = vshll.u32 %v142, 30
    %v144 = vsub.s32 %v140, %v143
    %vm145 = vcmp.lt.s32.totalorder %v144, 0
    %v146 = vsub.s32 0, %v144
    %v147 = vsel %vm145, %v146, %v144
    %v148 = vclz %v147
    %v149 = vsub.s32 %v148, 2
    %vm150 = vcmp.gt.s32.totalorder 0, %v149
    %v151 = vsel %vm150, 0, %v149
    %v152 = vsub.s32 32, %v151
    %v153 = vshll.u32 %v144, %v151
    %v154 = vshrl.u32 %v136, %v152
    %v155 = vor.u32 %v153, %v154
    %v156 = vsub.s32 4294967266, %v151
    %v157 = vadd.s32 %v156, 127
    %v158 = vshll.u32 %v157, 23
    %v159 = vor.u32 4788187, %v158
    %v160 = vand.u32 2147483647, %v159
    %v162 = vcvt.s32.f32 %v155
    %v163 = vmul.f32 %v162, %v160
    %v164 = vxor.u32 %v163, 2147483648
    %v165 = vsel %vm44, %v164, %v163
    %v166 = vsub.s32 4, %v142
    %v167 = vsel %vm44, %v166, %v142
    %v168 = vsel %vm43, %v41, %v165
    %v169 = vsel %vm43, 0, %v167
    %v170 = vmul.f32 %v168, %v168
    %v171 = vmul.f32 %v170, -0.001358992
    %v172 = vadd.f32 %v171, 0.041655596
    %v173 = vmul.f32 %v170, %v172
    %v174 = vadd.f32 %v173, -0.4999988
    %v175 = vmul.f32 %v170, %v174
    %v176 = vadd.f32 1.0, %v175
    %v177 = vmul.f32 %v168, %v168
    %v178 = vmul.f32 %v177, -0.00019511016
    %v179 = vadd.f32 %v178, 0.008332121
    %v180 = vmul.f32 %v177, %v179
    %v181 = vadd.f32 %v180, -0.16666654
    %v182 = vmul.f32 %v177, %v181
    %v183 = vadd.f32 %v182, 1.0
    %v184 = vmul.f32 %v183, %v168
    %vm185 = vweird.f32 %v41
    %v186 = vand.u32 %v169, 3
    %vm187 = vcmp.lt.s32.totalorder %v186, 2
    %vm188 = vcmp.eq.s32.totalorder %v186, 0
    %v189 = vxor.u32 %v184, 2147483648
    %v190 = vsel %vm188, %v176, %v189
    %vm191 = vcmp.eq.s32.totalorder %v186, 2
    %v192 = vxor.u32 %v176, 2147483648
    %v193 = vsel %vm191, %v192, %v184
    %v194 = vsel %vm187, %v190, %v193
    %v195 = vsel %vm185, nan, %v194
    %196 = vst [vmem:[#allocation2] sm:$0xff] %v195
    // Predicated region
    $region10: #{tpu_custom_call.1} parent=1 // pred_check
      _
    $region11: #{tpu_custom_call.1} parent=1 // pred_check_branch
      %198 = sbr.rel (0) target = $region13
    $region12: #{tpu_custom_call.1} parent=1 // pred_region
      %200 = vsyncadd [#allocation3], 0
      %s202 = sshll.u32 [#allocation2], 4
      %s203 = int_to_ptr.vmem [resolvable:$true] %s202
      %s204 = sshll.u32 %s2, 4
      %s205 = int_to_ptr.hbm [resolvable:$true] %s204
      %207 = dma.vmem_to_hbm [thread:$0]  %s203, 128, %s205, [#allocation3]
    $region13: #{tpu_custom_call.1} parent=1 // pred_fallthru
      _
    // Predicated region
    $region14: #{tpu_custom_call.1} parent=1 // pred_check
      _
    $region15: #{tpu_custom_call.1} parent=1 // pred_check_branch
      %209 = sbr.rel (0) target = $region17
    $region16: #{tpu_custom_call.1} parent=1 // pred_region
      %211 = dma.done [#allocation3], 128
    $region17: #{tpu_custom_call.1} parent=1 // pred_fallthru
      _
    %212 = vsyncpa [#allocation3], 1

</llo_original>
